<compile_context>
chip_gen: v7x
topology: tpu7x:2x2x1
jax: 0.10.0
libtpu: 0.0.40
codegen_flags: <defaults>
</compile_context>

<pallas_src>
import jax
import jax.numpy as jnp
from jax.experimental import pallas as pl
from jax.experimental.pallas import tpu as pltpu


def _fma_kernel(x1_ref, x2_ref, x3_ref, o_ref):
    # Broadcast operands arrive with size-1 block dims; jnp broadcasting
    # expands them on the VPU.  Dtype conversion also happens here (VALU
    # slack) instead of as a separate HBM-copying op in the wrapper.
    dt = o_ref.dtype
    o_ref[...] = (x1_ref[...].astype(dt)
                  + x2_ref[...].astype(dt) * x3_ref[...].astype(dt))


_SUBLANE_UNIT = {4: 8, 2: 16, 1: 32}   # itemsize -> sublane packing unit


def _sublane_unit(*dtypes):
    unit = 8
    for dt in dtypes:
        unit = max(unit, _SUBLANE_UNIT.get(jnp.dtype(dt).itemsize, 8))
    return unit


def _round_up(x, m):
    return ((x + m - 1) // m) * m


def _pick_tiles(R, C, out_itemsize, unit_r, *, block_budget_bytes=2 << 20):
    """Pick (tile_r, tile_c) for a cdiv grid under a per-block VMEM budget."""
    # Columns: prefer the full row width (one contiguous HBM range per row
    # group, unmasked lane-dense stores) as long as a unit_r-row strip fits
    # the budget; otherwise the largest multiple of 128 that does.
    if C <= 128 or C * unit_r * out_itemsize <= block_budget_bytes:
        tile_c = C                                    # full extent: always legal
    else:
        tile_c = (block_budget_bytes // (unit_r * out_itemsize) // 128) * 128
        tile_c = max(128, min(tile_c, (C // 128) * 128))

    # Rows: fill the per-block budget with the chosen width.
    rows = block_budget_bytes // (tile_c * out_itemsize)
    rows = max(unit_r, (rows // unit_r) * unit_r)
    if rows >= R:
        tile_r = R
        # Still split into >=2 row blocks so both v7x TensorCores participate
        # (neutral on single-TC v5e/v6e).
        if R >= 2 * unit_r:
            half = _round_up(pl.cdiv(R, 2), unit_r)
            if half < R:
                tile_r = half
    else:
        tile_r = rows
    return tile_r, tile_c


def _as_2d(x):
    if x.ndim < 2:
        x = jnp.reshape(x, (1,) * (2 - x.ndim) + x.shape)
    return x


def fused_add_mul(x1, x2, x3, *, min_out_bytes=1 << 20, force_pallas=False):
    x1, x2, x3 = jnp.asarray(x1), jnp.asarray(x2), jnp.asarray(x3)

    # The kernel below is 2-D; fall back to plain JAX for higher ranks.
    if max(x.ndim for x in (x1, x2, x3)) > 2:
        return x1 + x2 * x3

    x1, x2, x3 = _as_2d(x1), _as_2d(x2), _as_2d(x3)
    out_shape = jnp.broadcast_shapes(x1.shape, x2.shape, x3.shape)
    out_dtype = jnp.result_type(x1.dtype, x2.dtype, x3.dtype)
    R, C = out_shape
    out_itemsize = jnp.dtype(out_dtype).itemsize

    # Tiny problems: pallas_call dispatch + per-step overhead dominates; XLA's
    # fused elementwise op is already roofline-optimal at that scale.
    if (R * C * out_itemsize) < min_out_bytes and not force_pallas:
        return x1 + x2 * x3

    unit_r = _sublane_unit(x1.dtype, x2.dtype, x3.dtype, out_dtype)
    tile_r, tile_c = _pick_tiles(R, C, out_itemsize, unit_r)
    grid = (pl.cdiv(R, tile_r), pl.cdiv(C, tile_c))

    def make_spec(x):
        r, c = x.shape
        br = tile_r if r == R else 1       # broadcast dims keep size-1 blocks
        bc = tile_c if c == C else 1
        def idx(i, j, _rf=(r == R), _cf=(c == C)):
            return (i if _rf else 0, j if _cf else 0)
        return pl.BlockSpec((br, bc), idx)

    out_spec = pl.BlockSpec((tile_r, tile_c), lambda i, j: (i, j))

    return pl.pallas_call(
        _fma_kernel,
        out_shape=jax.ShapeDtypeStruct((R, C), out_dtype),
        grid=grid,
        in_specs=[make_spec(x) for x in (x1, x2, x3)],
        out_specs=out_spec,
        compiler_params=pltpu.CompilerParams(
            dimension_semantics=("parallel", "parallel"),
        ),
    )(x1, x2, x3)


if __name__ == "__main__":
    key = jax.random.PRNGKey(0)
    k1, k2, k3, k4, k5, k6 = jax.random.split(key, 6)

    # Small broadcast-compatible shapes (the original repro's shapes do not
    # broadcast); exercises both row- and column-broadcast operands.
    # force_pallas=True so the small demo actually runs the Pallas kernel.
    x_1 = jax.random.normal(k1, (64, 256), dtype=jnp.float32)
    x_2 = jax.random.normal(k2, (64, 1), dtype=jnp.float32)    # broadcast cols
    x_3 = jax.random.normal(k3, (1, 256), dtype=jnp.float32)   # broadcast rows
    out = fused_add_mul(x_1, x_2, x_3, force_pallas=True)
    jax.block_until_ready(out)
    ref = x_1 + x_2 * x_3
    assert out.shape == ref.shape and out.dtype == ref.dtype
    assert jnp.allclose(out, ref, atol=1e-6, rtol=1e-6)

    # Ragged shapes (not multiples of 8 / 128): exercises the cdiv grid and
    # masked last blocks.
    y_1 = jax.random.normal(k4, (136, 200), dtype=jnp.float32)
    y_2 = jax.random.normal(k5, (136, 1), dtype=jnp.float32)
    y_3 = jax.random.normal(k6, (1, 200), dtype=jnp.float32)
    out2 = fused_add_mul(y_1, y_2, y_3, force_pallas=True)
    jax.block_until_ready(out2)
    ref2 = y_1 + y_2 * y_3
    assert out2.shape == ref2.shape and out2.dtype == ref2.dtype
    assert jnp.allclose(out2, ref2, atol=1e-6, rtol=1e-6)

    print("KERNEL_OK")
</pallas_src>

<mosaic_0001>
module attributes {stable_mosaic.version = 11 : i64} {
  func.func @_fma_kernel(%arg0: i32, %arg1: i32, %arg2: memref<32x256xf32, #tpu.memory_space<vmem>>, %arg3: memref<32x1xf32, #tpu.memory_space<vmem>>, %arg4: memref<1x256xf32, #tpu.memory_space<vmem>>, %arg5: memref<32x256xf32, #tpu.memory_space<vmem>>) attributes {dimension_semantics = [#tpu.dimension_semantics<parallel>, #tpu.dimension_semantics<parallel>], iteration_bounds = array<i64: 2, 1>, scalar_prefetch = 0 : i64, scratch_operands = 0 : i64, tpu.core_type = #tpu.core_type<tc>, window_params = [{transform_indices = @transform_0, window_bounds = array<i64: 32, 256>}, {transform_indices = @transform_1, window_bounds = array<i64: 32, 1>}, {transform_indices = @transform_2, window_bounds = array<i64: 1, 256>}, {transform_indices = @transform_3, window_bounds = array<i64: 32, 256>}]} {
    %c0 = arith.constant 0 : index
    %c0_0 = arith.constant 0 : index
    %0 = vector.load %arg2[%c0, %c0_0] : memref<32x256xf32, #tpu.memory_space<vmem>>, vector<32x256xf32>
    %c0_1 = arith.constant 0 : index
    %c0_2 = arith.constant 0 : index
    %1 = vector.load %arg3[%c0_1, %c0_2] : memref<32x1xf32, #tpu.memory_space<vmem>>, vector<32x1xf32>
    %c0_3 = arith.constant 0 : index
    %c0_4 = arith.constant 0 : index
    %2 = vector.load %arg4[%c0_3, %c0_4] : memref<1x256xf32, #tpu.memory_space<vmem>>, vector<1x256xf32>
    %3 = vector.broadcast %1 : vector<32x1xf32> to vector<32x256xf32>
    %4 = vector.broadcast %2 : vector<1x256xf32> to vector<32x256xf32>
    %5 = arith.mulf %3, %4 : vector<32x256xf32>
    %6 = arith.addf %0, %5 : vector<32x256xf32>
    %c0_5 = arith.constant 0 : index
    %c0_6 = arith.constant 0 : index
    %7 = vector.load %arg5[%c0_5, %c0_6] : memref<32x256xf32, #tpu.memory_space<vmem>>, vector<32x256xf32>
    tpu.vector_store %arg5[%c0_5, %c0_6], %6 {strides = array<i32>} : memref<32x256xf32, #tpu.memory_space<vmem>>, vector<32x256xf32>,
    return
  }
  func.func @transform_0(%arg0: i32, %arg1: i32) -> (i32, i32) {
    %c0_i32 = arith.constant 0 : i32
    return %arg0, %arg1 : i32, i32
  }
  func.func @transform_1(%arg0: i32, %arg1: i32) -> (i32, i32) {
    %c0_i32 = arith.constant 0 : i32
    %c0_i32_0 = arith.constant 0 : i32
    return %arg0, %c0_i32 : i32, i32
  }
  func.func @transform_2(%arg0: i32, %arg1: i32) -> (i32, i32) {
    %c0_i32 = arith.constant 0 : i32
    %c0_i32_0 = arith.constant 0 : i32
    return %c0_i32, %arg1 : i32, i32
  }
  func.func @transform_3(%arg0: i32, %arg1: i32) -> (i32, i32) {
    %c0_i32 = arith.constant 0 : i32
    return %arg0, %arg1 : i32, i32
  }
}

</mosaic_0001>

<llo_original>
// kernel: tpu_custom_call.1
$region0: #{tpu_custom_call.1}
  #allocation0 [shape = 'u32[]', space=smem, size = 0x4, offset = 0x4, fixed_abs, tag = 'smem constant byte address 0x4 - core index']
  #allocation1 [shape = 'u32[144,128]{1,0:T(1,128)}', space=vmem, size = 0x12000, scoped, tag = 'internal scratch']
  %s0 = inlined_call_operand.hbm [shape: f32[64,256], index: 0, kind: input, shape index: {}]
  %s1 = inlined_call_operand.vmem [shape: f32[64,1], index: 1, kind: input, shape index: {}]
  %s2 = inlined_call_operand.vmem [shape: f32[1,256], index: 2, kind: input, shape index: {}]
  %s3 = inlined_call_operand.hbm [shape: f32[64,256], index: 3, kind: output, shape index: {}]
  %s4 = sld [smem:[#allocation0]]
  $region49: #{tpu_custom_call.1} parent=0
    _
  %s6 = ssub.s32 1, %s4
  %s7 = scalar_select 0, %s6, %s4
  $region1: #{tpu_custom_call.1} parent=0
    #allocation2 [shape = 'u8[65536]{0}', space=vmem, size = 0x10000, scoped, tag = 'input window, operand 0']
    #allocation3 [shape = 's32[2]{0}', space=sflag, size = 0x8, scoped, tag = 'scoped memory for tpu_custom_call.1']
    #allocation4 [shape = 's32[2]{0}', space=sflag, size = 0x8, scoped, tag = 'scoped memory for tpu_custom_call.1']
    #allocation5 [shape = 'u8[65536]{0}', space=vmem, size = 0x10000, scoped, tag = 'output window, operand 0']
    %8 = vsyncpa [#allocation3], 0
    %s9 = scalar_lea.sflag [#allocation3], 1
    %10 = vsyncpa %s9, 0
    %11 = vsyncpa [#allocation4], 0
    %s12 = scalar_lea.sflag [#allocation4], 1
    %13 = vsyncpa %s12, 0
    loop: start=0, step=1, limit=4
    $region2: #{tpu_custom_call.1} parent=1 // loop_pre_header
      _
    $region3: #{tpu_custom_call.1} parent=1 // loop_header
      %s15 = sphi 0, %s19
      %p16 = scmp.ge.s32.totalorder %s15, 4
      %s22 = sphi 0, %s34
      %s23 = sphi 0, %s30
      %s24 = sphi 0, %s22
      %s25 = sphi 0, %s23
      %s26 = sphi 0, %s24
      %s27 = sphi 0, %s25
      %s39 = sphi 0, %s41
      %s42 = sphi 0, %s39
      %s43 = sphi 0, %s42
      %s59 = sphi 0, %s43
      %s65 = sphi 0, %s67
      %s68 = sphi 0, %s65
      %s69 = sphi 0, %s68
      %s85 = sphi 0, %s69
      %s91 = sphi 0, %s93
      %s94 = sphi 0, %s91
      %s95 = sphi 0, %s94
      %s111 = sphi 0, %s95
      %s119 = sphi 0, %s121
      %s122 = sphi 0, %s119
      %s123 = sphi 0, %s122
      %s139 = sphi 0, %s123
    $region4: #{tpu_custom_call.1} parent=1 // loop_header_branch
      %18 = sbr.rel (%p16) target = $region8
    $region5: #{tpu_custom_call.1} parent=1 // loop_body
      %s20 = ssub.s32 %s15, 1
      %s21 = ssub.s32 %s15, 2
      %s28 = sadd.s32 1, %s23
      %p29 = scmp.ge.s32.totalorder %s28, 1
      %s30 = scalar_select %p29, 0, %s28
      %s31 = sadd.s32 1, %s22
      %s32 = scalar_select %p29, %s31, %s22
      %p33 = scmp.ge.s32.totalorder %s32, 2
      %s34 = scalar_select %p33, 0, %s32
      %s35 = ssub.s32 %s22, %s34
      %s36 = ssub.s32 %s23, %s30
      %s37 = sor.u32 %s35, %s36
      %p38 = scmp.eq.s32.totalorder %s37, 0
      %s40 = sadd.s32 %s39, 1
      %s41 = scalar_select %p38, %s39, %s40
      %p44 = pneg %p38
      %p45 = scmp.eq.s32.totalorder %s15, 1
      %p46 = por %p44, %p45
      %p47 = scmp.ne.s32.totalorder %s39, %s42
      %p48 = scmp.eq.s32.totalorder %s15, 0
      %p49 = por %p47, %p48
      %p50 = scmp.ne.s32.totalorder %s39, %s42
      %p51 = scmp.eq.s32.totalorder %s20, 1
      %p52 = por %p50, %p51
      %p53 = scmp.ne.s32.totalorder %s42, %s43
      %p54 = scmp.eq.s32.totalorder %s20, 0
      %p55 = por %p53, %p54
      %p56 = scmp.ne.s32.totalorder %s42, %s43
      %p57 = scmp.eq.s32.totalorder %s21, 1
      %p58 = por %p56, %p57
      %p60 = scmp.ne.s32.totalorder %s43, %s59
      %p61 = scmp.eq.s32.totalorder %s21, 0
      %p62 = por %p60, %p61
      %s63 = ssub.s32 %s22, %s34
      %p64 = scmp.eq.s32.totalorder %s63, 0
      %s66 = sadd.s32 %s65, 1
      %s67 = scalar_select %p64, %s65, %s66
      %p70 = pneg %p64
      %p71 = scmp.eq.s32.totalorder %s15, 1
      %p72 = por %p70, %p71
      %p73 = scmp.ne.s32.totalorder %s65, %s68
      %p74 = scmp.eq.s32.totalorder %s15, 0
      %p75 = por %p73, %p74
      %p76 = scmp.ne.s32.totalorder %s65, %s68
      %p77 = scmp.eq.s32.totalorder %s20, 1
      %p78 = por %p76, %p77
      %p79 = scmp.ne.s32.totalorder %s68, %s69
      %p80 = scmp.eq.s32.totalorder %s20, 0
      %p81 = por %p79, %p80
      %p82 = scmp.ne.s32.totalorder %s68, %s69
      %p83 = scmp.eq.s32.totalorder %s21, 1
      %p84 = por %p82, %p83
      %p86 = scmp.ne.s32.totalorder %s69, %s85
      %p87 = scmp.eq.s32.totalorder %s21, 0
      %p88 = por %p86, %p87
      %s89 = ssub.s32 %s23, %s30
      %p90 = scmp.eq.s32.totalorder %s89, 0
      %s92 = sadd.s32 %s91, 1
      %s93 = scalar_select %p90, %s91, %s92
      %p96 = pneg %p90
      %p97 = scmp.eq.s32.totalorder %s15, 1
      %p98 = por %p96, %p97
      %p99 = scmp.ne.s32.totalorder %s91, %s94
      %p100 = scmp.eq.s32.totalorder %s15, 0
      %p101 = por %p99, %p100
      %p102 = scmp.ne.s32.totalorder %s91, %s94
      %p103 = scmp.eq.s32.totalorder %s20, 1
      %p104 = por %p102, %p103
      %p105 = scmp.ne.s32.totalorder %s94, %s95
      %p106 = scmp.eq.s32.totalorder %s20, 0
      %p107 = por %p105, %p106
      %p108 = scmp.ne.s32.totalorder %s94, %s95
      %p109 = scmp.eq.s32.totalorder %s21, 1
      %p110 = por %p108, %p109
      %p112 = scmp.ne.s32.totalorder %s95, %s111
      %p113 = scmp.eq.s32.totalorder %s21, 0
      %p114 = por %p112, %p113
      %s115 = ssub.s32 %s22, %s34
      %s116 = ssub.s32 %s23, %s30
      %s117 = sor.u32 %s115, %s116
      %p118 = scmp.eq.s32.totalorder %s117, 0
      %s120 = sadd.s32 %s119, 1
      %s121 = scalar_select %p118, %s119, %s120
      %p124 = pneg %p118
      %p125 = scmp.eq.s32.totalorder %s15, 1
      %p126 = por %p124, %p125
      %p127 = scmp.ne.s32.totalorder %s119, %s122
      %p128 = scmp.eq.s32.totalorder %s15, 0
      %p129 = por %p127, %p128
      %p130 = scmp.ne.s32.totalorder %s119, %s122
      %p131 = scmp.eq.s32.totalorder %s20, 1
      %p132 = por %p130, %p131
      %p133 = scmp.ne.s32.totalorder %s122, %s123
      %p134 = scmp.eq.s32.totalorder %s20, 0
      %p135 = por %p133, %p134
      %p136 = scmp.ne.s32.totalorder %s122, %s123
      %p137 = scmp.eq.s32.totalorder %s21, 1
      %p138 = por %p136, %p137
      %p140 = scmp.ne.s32.totalorder %s123, %s139
      %p141 = scmp.eq.s32.totalorder %s21, 0
      %p142 = por %p140, %p141
      %p143 = scmp.le.s32.totalorder 1, %s15
      %p144 = scmp.lt.s32.totalorder %s15, 3
      %p145 = pnand %p143, %p144
      %p146 = pneg %p145
      // Predicated region
      $region9: #{tpu_custom_call.1} parent=5 // pred_check
        _
      $region10: #{tpu_custom_call.1} parent=5 // pred_check_branch
        %148 = sbr.rel (%p145) target = $region12
      $region11: #{tpu_custom_call.1} parent=5 // pred_region
        %s149 = ssub.s32 %s15, 1
        // Predicated region
        $region13: #{tpu_custom_call.1} parent=11 // pred_check
          %p150 = pneg %p107
        $region14: #{tpu_custom_call.1} parent=11 // pred_check_branch
          %152 = sbr.rel (%p150) target = $region16
        $region15: #{tpu_custom_call.1} parent=11 // pred_region
          %s153 = smul.u32 2, %s25
          %p154 = scmp.lt.s32.totalorder %s153, 1
          %s155 = scalar_select %p154, %s153, 1
          %s156 = scalar_lea.vmem %s2, %s155
          %s157 = smul.u32 2, %s25
        $region16: #{tpu_custom_call.1} parent=11 // pred_fallthru
          _
      $region12: #{tpu_custom_call.1} parent=5 // pred_fallthru
        _
      %p158 = scmp.lt.s32.totalorder %s15, 2
      // Predicated region
      $region17: #{tpu_custom_call.1} parent=5 // pred_check
        %p159 = pneg %p158
      $region18: #{tpu_custom_call.1} parent=5 // pred_check_branch
        %161 = sbr.rel (%p159) target = $region20
      $region19: #{tpu_custom_call.1} parent=5 // pred_region
        // Predicated region
        $region21: #{tpu_custom_call.1} parent=19 // pred_check
          %p162 = pneg %p49
        $region22: #{tpu_custom_call.1} parent=19 // pred_check_branch
          %164 = sbr.rel (%p162) target = $region24
        $region23: #{tpu_custom_call.1} parent=19 // pred_region
          %s165 = sand.u32 %s39, 1
          %s166 = scalar_lea.sflag [#allocation3], %s165
          %s167 = sand.u32 %s39, 1
          %s168 = smul.addr %s167, 64
          %s169 = scalar_lea.vmem [#allocation2], %s168
          %s170 = smul.u32 4, %s22
          %s171 = smul.u32 2, %s23
          %s173 = ssub.s32 1024, 1024
          %174 = vsyncadd %s166, %s173
          %s175 = smul.addr %s170, 2
          %s176 = sadd.s32 %s171, %s175
          %s177 = smul.addr %s176, 128
          %s178 = scalar_lea.hbm %s0, %s177
          %s179 = sshll.u32 %s169, 4
          %s180 = int_to_ptr.vmem [resolvable:$true] %s179
          %185 = dma.hbm_to_vmem [thread:$0]  %s178, 1024, %s180, %s166, 256, 256, 16
        $region24: #{tpu_custom_call.1} parent=19 // pred_fallthru
          _
        // Predicated region
        $region25: #{tpu_custom_call.1} parent=19 // pred_check
          %p186 = pneg %p75
        $region26: #{tpu_custom_call.1} parent=19 // pred_check_branch
          %188 = sbr.rel (%p186) target = $region28
        $region27: #{tpu_custom_call.1} parent=19 // pred_region
          %s189 = smul.u32 4, %s22
          %p190 = scmp.lt.s32.totalorder %s189, 7
          %s191 = scalar_select %p190, %s189, 7
          %s192 = smul.addr %s191, 8
          %s193 = scalar_lea.vmem %s1, %s192
          %s194 = smul.u32 4, %s22
        $region28: #{tpu_custom_call.1} parent=19 // pred_fallthru
          _
      $region20: #{tpu_custom_call.1} parent=5 // pred_fallthru
        _
      %p195 = scmp.le.s32.totalorder 1, %s15
      %p196 = scmp.lt.s32.totalorder %s15, 3
      %p197 = pnand %p195, %p196
      %p198 = pneg %p197
      // Predicated region
      $region29: #{tpu_custom_call.1} parent=5 // pred_check
        _
      $region30: #{tpu_custom_call.1} parent=5 // pred_check_branch
        %200 = sbr.rel (%p197) target = $region32
      $region31: #{tpu_custom_call.1} parent=5 // pred_region
        %s201 = ssub.s32 %s15, 1
        %s202 = sand.u32 %s42, 1
        %s203 = scalar_lea.sflag [#allocation3], %s202
        %s204 = sand.u32 %s42, 1
        %s205 = smul.addr %s204, 64
        %s206 = scalar_lea.vmem [#allocation2], %s205
        // Predicated region
        $region33: #{tpu_custom_call.1} parent=31 // pred_check
          %p207 = pneg %p55
        $region34: #{tpu_custom_call.1} parent=31 // pred_check_branch
          %209 = sbr.rel (%p207) target = $region36
        $region35: #{tpu_custom_call.1} parent=31 // pred_region
          %210 = dma.done %s203, 1024
        $region36: #{tpu_custom_call.1} parent=31 // pred_fallthru
          _
        %s211 = sand.u32 %s42, 1
        %s212 = scalar_lea.sflag [#allocation3], %s211
        %s213 = sand.u32 %s42, 1
        %s214 = smul.addr %s213, 64
        %s215 = scalar_lea.vmem [#allocation2], %s214
        %p216 = pneg %p55
        %p217 = pneg %p52
        %s218 = smul.u32 4, %s24
        %p219 = scmp.lt.s32.totalorder %s218, 7
        %s220 = scalar_select %p219, %s218, 7
        %s221 = smul.addr %s220, 8
        %s222 = scalar_lea.vmem %s1, %s221
        %p223 = pneg %p81
        %p224 = pneg %p78
        %s225 = smul.u32 2, %s25
        %p226 = scmp.lt.s32.totalorder %s225, 1
        %s227 = scalar_select %p226, %s225, 1
        %s228 = scalar_lea.vmem %s2, %s227
        %p229 = pneg %p107
        %p230 = pneg %p104
        %p231 = pneg %p135
        %p232 = pneg %p132
        %s233 = sand.u32 %s122, 1
        %s234 = scalar_lea.sflag [#allocation4], %s233
        %s235 = sand.u32 %s122, 1
        %s236 = smul.addr %s235, 64
        %s237 = scalar_lea.vmem [#allocation5], %s236
        %s238 = smul.u32 4, %s24
        %s239 = smul.u32 2, %s25
        %s240 = smul.u32 4, %s24
        %p241 = scmp.lt.s32.totalorder %s240, 7
        %s242 = scalar_select %p241, %s240, 7
        %s243 = smul.addr %s242, 8
        %s244 = scalar_lea.vmem %s1, %s243
        %s245 = smul.u32 4, %s24
        %s246 = smul.u32 2, %s25
        %p247 = scmp.lt.s32.totalorder %s246, 1
        %s248 = scalar_select %p247, %s246, 1
        %s249 = scalar_lea.vmem %s2, %s248
        %s250 = smul.u32 2, %s25
        %s251 = smul.u32 4, %s24
        %s252 = smul.u32 2, %s25
        %v253 = vld [vmem:[%s206] sm:$0xff]
        %v254 = vld [vmem:[%s206 + $0x8] sm:$0xff]
        %v255 = vld [vmem:[%s206 + $0x10] sm:$0xff]
        %v256 = vld [vmem:[%s206 + $0x18] sm:$0xff]
        %v257 = vld [vmem:[%s206 + $0x20] sm:$0xff]
        %v258 = vld [vmem:[%s206 + $0x28] sm:$0xff]
        %v259 = vld [vmem:[%s206 + $0x30] sm:$0xff]
        %v260 = vld [vmem:[%s206 + $0x38] sm:$0xff]
        %v261 = vld [vmem:[%s244] sm:$0xff]
        %v262 = vld [vmem:[%s244 + $0x8] sm:$0xff]
        %v263 = vld [vmem:[%s244 + $0x10] sm:$0xff]
        %v264 = vld [vmem:[%s244 + $0x18] sm:$0xff]
        %v265 = vld [vmem:[%s249] sm:$0x3]
        %267 = vset.pattern.permute.xlu0 0
        %268 = vperm.xlu0 %267, %v261
        %v269 = vpop.permute.xlu0 %268
        %272 = vset.pattern.permute.xlu0 0
        %273 = vperm.xlu0 %272, %v262
        %v274 = vpop.permute.xlu0 %273
        %277 = vset.pattern.permute.xlu0 0
        %278 = vperm.xlu0 %277, %v263
        %v279 = vpop.permute.xlu0 %278
        %282 = vset.pattern.permute.xlu0 0
        %283 = vperm.xlu0 %282, %v264
        %v284 = vpop.permute.xlu0 %283
        %v287 = vlaneseq
        %v288 = vshrl.u32 %v287, 7
        %v289 = vsub.s32 0, %v288
        %v290 = vrot.slane %v265, %v289
        %v291 = vlaneseq
        %v292 = vshrl.u32 %v291, 7
        %v293 = vsub.s32 1, %v292
        %v294 = vrot.slane %v265, %v293
        %v297 = vmul.f32 %v269, %v290
        %v298 = vmul.f32 %v269, %v294
        %v299 = vmul.f32 %v274, %v290
        %v300 = vmul.f32 %v274, %v294
        %v301 = vmul.f32 %v279, %v290
        %v302 = vmul.f32 %v279, %v294
        %v303 = vmul.f32 %v284, %v290
        %v304 = vmul.f32 %v284, %v294
        %v305 = vadd.f32 %v253, %v297
        %v306 = vadd.f32 %v254, %v298
        %v307 = vadd.f32 %v255, %v299
        %v308 = vadd.f32 %v256, %v300
        %v309 = vadd.f32 %v257, %v301
        %v310 = vadd.f32 %v258, %v302
        %v311 = vadd.f32 %v259, %v303
        %v312 = vadd.f32 %v260, %v304
        %313 = vst [vmem:[%s237] sm:$0xff] %v305
        %314 = vst [vmem:[%s237 + $0x8] sm:$0xff] %v306
        %315 = vst [vmem:[%s237 + $0x10] sm:$0xff] %v307
        %316 = vst [vmem:[%s237 + $0x18] sm:$0xff] %v308
        %317 = vst [vmem:[%s237 + $0x20] sm:$0xff] %v309
        %318 = vst [vmem:[%s237 + $0x28] sm:$0xff] %v310
        %319 = vst [vmem:[%s237 + $0x30] sm:$0xff] %v311
        %320 = vst [vmem:[%s237 + $0x38] sm:$0xff] %v312
        %s321 = sand.u32 %s122, 1
        %s322 = scalar_lea.sflag [#allocation4], %s321
        %s323 = sand.u32 %s122, 1
        %s324 = smul.addr %s323, 64
        %s325 = scalar_lea.vmem [#allocation5], %s324
        // Predicated region
        $region37: #{tpu_custom_call.1} parent=31 // pred_check
          %p326 = pneg %p132
        $region38: #{tpu_custom_call.1} parent=31 // pred_check_branch
          %328 = sbr.rel (%p326) target = $region40
        $region39: #{tpu_custom_call.1} parent=31 // pred_region
          %s329 = smul.u32 4, %s24
          %s330 = smul.u32 2, %s25
          %s332 = ssub.s32 1024, 1024
          %333 = vsyncadd %s322, %s332
          %s334 = smul.addr %s329, 2
          %s335 = sadd.s32 %s330, %s334
          %s336 = smul.addr %s335, 128
          %s337 = scalar_lea.hbm %s3, %s336
          %s338 = sshll.u32 %s325, 4
          %s339 = int_to_ptr.vmem [resolvable:$true] %s338
          %344 = dma.vmem_to_hbm [thread:$0]  %s339, 1024, %s337, %s322, 256, 256, 16
        $region40: #{tpu_custom_call.1} parent=31 // pred_fallthru
          _
      $region32: #{tpu_custom_call.1} parent=5 // pred_fallthru
        _
      %p345 = scmp.le.s32.totalorder 2, %s15
      // Predicated region
      $region41: #{tpu_custom_call.1} parent=5 // pred_check
        %p346 = pneg %p345
      $region42: #{tpu_custom_call.1} parent=5 // pred_check_branch
        %348 = sbr.rel (%p346) target = $region44
      $region43: #{tpu_custom_call.1} parent=5 // pred_region
        %s349 = ssub.s32 %s15, 2
        // Predicated region
        $region45: #{tpu_custom_call.1} parent=43 // pred_check
          %p350 = pneg %p138
        $region46: #{tpu_custom_call.1} parent=43 // pred_check_branch
          %352 = sbr.rel (%p350) target = $region48
        $region47: #{tpu_custom_call.1} parent=43 // pred_region
          %s353 = sand.u32 %s123, 1
          %s354 = scalar_lea.sflag [#allocation4], %s353
          %s355 = sand.u32 %s123, 1
          %s356 = smul.addr %s355, 64
          %s357 = scalar_lea.vmem [#allocation5], %s356
          %358 = dma.done %s354, 1024
        $region48: #{tpu_custom_call.1} parent=43 // pred_fallthru
          _
      $region44: #{tpu_custom_call.1} parent=5 // pred_fallthru
        _
    $region6: #{tpu_custom_call.1} parent=1 // loop_footer
      %s19 = sadd.s32 1, %s15
    $region7: #{tpu_custom_call.1} parent=1 // loop_footer_branch
      %14 = sbr.rel target = $region3
    $region8: #{tpu_custom_call.1} parent=1 // loop_exit
      _
    %359 = vsyncpa [#allocation3], 1
    %s360 = scalar_lea.sflag [#allocation3], 1
    %361 = vsyncpa %s360, 1
    %362 = vsyncpa [#allocation4], 1
    %s363 = scalar_lea.sflag [#allocation4], 1
    %364 = vsyncpa %s363, 1

</llo_original>
